<compile_context>
chip_gen: v5e
topology: v5e:2x2
jax: 0.10.0
libtpu: 0.0.40
codegen_flags: <defaults>
</compile_context>

<pallas_src>
import math
import functools

import jax
import jax.numpy as jnp
from jax.experimental import pallas as pl
from jax.experimental.pallas import tpu as pltpu


# --------------------------------------------------------------------------
# Helpers
# --------------------------------------------------------------------------

def _pick_tile(dim, pref, align=8):
    """Largest tile t <= pref with dim % t == 0 and t % align == 0.
    Falls back to the full dim (block == full array dim is always legal)."""
    if dim <= pref:
        return dim
    start = (pref // align) * align
    for t in range(start, 0, -align):
        if dim % t == 0:
            return t
    return dim


def _nbytes(shape, dtype):
    n = 1
    for d in shape:
        n *= int(d)
    return n * jnp.dtype(dtype).itemsize


def _compiler_params(semantics, est_block_bytes):
    # 2x for double-buffering + headroom; clamp to [32 MiB, 64 MiB] so the
    # request is valid on every generation (v5e/v6e: 128 MiB physical VMEM,
    # v7x: 64 MiB physical).
    limit = int(min(64 * 2**20, max(32 * 2**20, 2 * est_block_bytes + (2 << 20))))
    return pltpu.CompilerParams(dimension_semantics=semantics,
                                vmem_limit_bytes=limit)


# --------------------------------------------------------------------------
# Kernel 1: src_word_emb + positional encoding + Encoder.layer_norm (fused)
# --------------------------------------------------------------------------

def _embed_pe_ln_kernel(x_ref, pe_ref, w_ref, g_ref, b_ref, o_ref, *, eps):
    x = x_ref[0]                                             # (ts, dff) bf16
    emb = jnp.dot(x, w_ref[...], preferred_element_type=jnp.float32)
    h = emb + pe_ref[...]                                    # PE broadcast over B
    mean = jnp.mean(h, axis=-1, keepdims=True)
    var = jnp.mean((h - mean) ** 2, axis=-1, keepdims=True)
    y = (h - mean) * jax.lax.rsqrt(var + eps) * g_ref[...] + b_ref[...]
    o_ref[0] = y.astype(o_ref.dtype)


def embed_pe_ln(x_bsd, pe, w_emb, gamma, beta, *, eps=1e-6, ts_pref=512):
    B, S, dff = x_bsd.shape
    d_model = w_emb.shape[1]
    ts = _pick_tile(S, ts_pref)
    est = sum([
        _nbytes((ts, dff), jnp.bfloat16),
        _nbytes((ts, d_model), jnp.float32),
        _nbytes((dff, d_model), jnp.bfloat16),
        2 * _nbytes((1, d_model), jnp.float32),
        _nbytes((ts, d_model), jnp.bfloat16),
    ])
    return pl.pallas_call(
        functools.partial(_embed_pe_ln_kernel, eps=eps),
        out_shape=jax.ShapeDtypeStruct((B, S, d_model), jnp.bfloat16),
        grid=(B, S // ts),
        in_specs=[
            pl.BlockSpec((1, ts, dff), lambda b, s: (b, s, 0)),
            pl.BlockSpec((ts, d_model), lambda b, s: (s, 0)),    # shared over B
            pl.BlockSpec((dff, d_model), lambda b, s: (0, 0)),
            pl.BlockSpec((1, d_model), lambda b, s: (0, 0)),
            pl.BlockSpec((1, d_model), lambda b, s: (0, 0)),
        ],
        out_specs=pl.BlockSpec((1, ts, d_model), lambda b, s: (b, s, 0)),
        compiler_params=_compiler_params(("parallel", "parallel"), est),
    )(x_bsd, pe, w_emb, gamma.reshape(1, -1), beta.reshape(1, -1))


# --------------------------------------------------------------------------
# Kernel 2: fused Q/K/V projection, head-major outputs, Q pre-scaled
# --------------------------------------------------------------------------

def _qkv_kernel(h_ref, wq_ref, wk_ref, wv_ref, q_ref, k_ref, v_ref, *, scale):
    x = h_ref[0]                                             # (ts, d_model) bf16
    q = jnp.dot(x, wq_ref[0], preferred_element_type=jnp.float32) * scale
    q_ref[0, 0] = q.astype(q_ref.dtype)
    k_ref[0, 0] = jnp.dot(x, wk_ref[0],
                          preferred_element_type=jnp.float32).astype(k_ref.dtype)
    v_ref[0, 0] = jnp.dot(x, wv_ref[0],
                          preferred_element_type=jnp.float32).astype(v_ref.dtype)


def qkv_proj(h, w_q, w_k, w_v, *, scale, ts_pref=512):
    B, S, d_model = h.shape
    H, _, d_k = w_q.shape
    d_v = w_v.shape[2]
    ts = _pick_tile(S, ts_pref)
    est = sum([
        _nbytes((ts, d_model), jnp.bfloat16),
        2 * _nbytes((d_model, d_k), jnp.bfloat16),
        _nbytes((d_model, d_v), jnp.bfloat16),
        2 * _nbytes((ts, d_k), jnp.bfloat16),
        _nbytes((ts, d_v), jnp.bfloat16),
    ])
    return pl.pallas_call(
        functools.partial(_qkv_kernel, scale=scale),
        out_shape=(jax.ShapeDtypeStruct((B, H, S, d_k), jnp.bfloat16),
                   jax.ShapeDtypeStruct((B, H, S, d_k), jnp.bfloat16),
                   jax.ShapeDtypeStruct((B, H, S, d_v), jnp.bfloat16)),
        grid=(B, S // ts, H),                 # head innermost: h-tile stays resident
        in_specs=[
            pl.BlockSpec((1, ts, d_model), lambda b, s, hh: (b, s, 0)),
            pl.BlockSpec((1, d_model, d_k), lambda b, s, hh: (hh, 0, 0)),
            pl.BlockSpec((1, d_model, d_k), lambda b, s, hh: (hh, 0, 0)),
            pl.BlockSpec((1, d_model, d_v), lambda b, s, hh: (hh, 0, 0)),
        ],
        out_specs=(
            pl.BlockSpec((1, 1, ts, d_k), lambda b, s, hh: (b, hh, s, 0)),
            pl.BlockSpec((1, 1, ts, d_k), lambda b, s, hh: (b, hh, s, 0)),
            pl.BlockSpec((1, 1, ts, d_v), lambda b, s, hh: (b, hh, s, 0)),
        ),
        compiler_params=_compiler_params(("parallel", "parallel", "parallel"), est),
    )(h, w_q, w_k, w_v)


# --------------------------------------------------------------------------
# Kernel 3: flash attention + W_o projection + residual + LayerNorm (fused)
#           grid (B, q-tiles, H, kv-tiles); online softmax; per-head context
#           is projected and accumulated into a (tq, d_model) VMEM scratch,
#           residual+LN run once in the final (h,kv) step.
# --------------------------------------------------------------------------

def _attn_kernel(q_ref, k_ref, v_ref, mk_ref, wo_ref, res_ref, g_ref, bb_ref,
                 o_ref, m_sc, l_sc, ctx_sc, out_sc, *, eps):
    hh = pl.program_id(2)
    kv = pl.program_id(3)
    n_h = pl.num_programs(2)
    n_kv = pl.num_programs(3)

    @pl.when((hh == 0) & (kv == 0))
    def _():
        out_sc[...] = jnp.zeros_like(out_sc)

    @pl.when(kv == 0)
    def _():
        m_sc[...] = jnp.full_like(m_sc, -jnp.inf)
        l_sc[...] = jnp.zeros_like(l_sc)
        ctx_sc[...] = jnp.zeros_like(ctx_sc)

    q = q_ref[0, 0]                                  # (tq, d_k)  bf16, pre-scaled
    k = k_ref[0, 0]                                  # (tkv, d_k) bf16
    v = v_ref[0, 0]                                  # (tkv, d_v) bf16
    s = jnp.einsum("qd,kd->qk", q, k, preferred_element_type=jnp.float32)
    s = jnp.where(mk_ref[0] != 0, s, -1e9)           # nonzero mask = attend

    m_prev = m_sc[...]
    m_new = jnp.maximum(m_prev, jnp.max(s, axis=-1, keepdims=True))
    alpha = jnp.exp(m_prev - m_new)
    p = jnp.exp(s - m_new)
    l_sc[...] = alpha * l_sc[...] + jnp.sum(p, axis=-1, keepdims=True)
    ctx_sc[...] = alpha * ctx_sc[...] + jnp.dot(
        p.astype(v.dtype), v, preferred_element_type=jnp.float32)
    m_sc[...] = m_new

    # Per-head finalize: project this head's context through its W_o slab and
    # accumulate — the (S, H*d_v) context never round-trips HBM.
    @pl.when(kv == n_kv - 1)
    def _():
        ctx = (ctx_sc[...] * pl.reciprocal(l_sc[...], approx=True)
               ).astype(jnp.bfloat16)
        out_sc[...] += jnp.dot(ctx, wo_ref[0], preferred_element_type=jnp.float32)

    # Block finalize: residual add + LayerNorm fused epilogue.
    @pl.when((hh == n_h - 1) & (kv == n_kv - 1))
    def _():
        y = out_sc[...] + res_ref[0].astype(jnp.float32)
        mean = jnp.mean(y, axis=-1, keepdims=True)
        var = jnp.mean((y - mean) ** 2, axis=-1, keepdims=True)
        o_ref[0] = ((y - mean) * jax.lax.rsqrt(var + eps)
                    * g_ref[...] + bb_ref[...]).astype(o_ref.dtype)


def attn_block(q, k, v, mask_i32, w_o, res, gamma, beta, *, eps=1e-6,
               tq_pref=256, tkv_pref=512):
    B, H, S, d_k = q.shape
    d_v = v.shape[3]
    d_model = w_o.shape[2]
    tq = _pick_tile(S, tq_pref, align=8)
    tkv = _pick_tile(S, tkv_pref, align=128)     # mask tile lane dim: 128-aligned
    est = sum([
        _nbytes((tq, d_k), jnp.bfloat16),
        _nbytes((tkv, d_k), jnp.bfloat16),
        _nbytes((tkv, d_v), jnp.bfloat16),
        _nbytes((tq, tkv), jnp.int32),
        _nbytes((d_v, d_model), jnp.bfloat16),
        2 * _nbytes((tq, d_model), jnp.bfloat16),
        2 * _nbytes((1, d_model), jnp.float32),
        _nbytes((tq, tkv), jnp.float32),         # transient score tile
        2 * _nbytes((tq, 1), jnp.float32),       # m, l scratch
        _nbytes((tq, d_v), jnp.float32),         # ctx scratch
        _nbytes((tq, d_model), jnp.float32),     # out accumulator scratch
    ])
    return pl.pallas_call(
        functools.partial(_attn_kernel, eps=eps),
        out_shape=jax.ShapeDtypeStruct((B, S, d_model), jnp.bfloat16),
        grid=(B, S // tq, H, S // tkv),
        in_specs=[
            pl.BlockSpec((1, 1, tq, d_k), lambda b, qi, hh, kv: (b, hh, qi, 0)),
            pl.BlockSpec((1, 1, tkv, d_k), lambda b, qi, hh, kv: (b, hh, kv, 0)),
            pl.BlockSpec((1, 1, tkv, d_v), lambda b, qi, hh, kv: (b, hh, kv, 0)),
            pl.BlockSpec((1, tq, tkv), lambda b, qi, hh, kv: (b, qi, kv)),
            pl.BlockSpec((1, d_v, d_model), lambda b, qi, hh, kv: (hh, 0, 0)),
            pl.BlockSpec((1, tq, d_model), lambda b, qi, hh, kv: (b, qi, 0)),
            pl.BlockSpec((1, d_model), lambda b, qi, hh, kv: (0, 0)),
            pl.BlockSpec((1, d_model), lambda b, qi, hh, kv: (0, 0)),
        ],
        out_specs=pl.BlockSpec((1, tq, d_model), lambda b, qi, hh, kv: (b, qi, 0)),
        scratch_shapes=[
            pltpu.VMEM((tq, 1), jnp.float32),        # running max m
            pltpu.VMEM((tq, 1), jnp.float32),        # running denominator l
            pltpu.VMEM((tq, d_v), jnp.float32),      # per-head context acc
            pltpu.VMEM((tq, d_model), jnp.float32),  # W_o-projected acc (all heads)
        ],
        compiler_params=_compiler_params(
            ("parallel", "parallel", "arbitrary", "arbitrary"), est),
    )(q, k, v, mask_i32, w_o, res, gamma.reshape(1, -1), beta.reshape(1, -1))


# --------------------------------------------------------------------------
# Kernel 4: FFN (w1+ReLU+w2) + residual + LayerNorm, dff tiled on a K-grid,
#           f1 never written to HBM, f32 accumulator scratch + pl.when epilogue
# --------------------------------------------------------------------------

def _ffn_res_ln_kernel(h_ref, w1_ref, b1_ref, w2_ref, b2_ref, g_ref, bb_ref,
                       o_ref, acc_ref, *, eps):
    kf = pl.program_id(2)

    @pl.when(kf == 0)
    def _():
        acc_ref[...] = jnp.zeros_like(acc_ref)

    x = h_ref[0]                                             # (ts, d_model) bf16
    f1 = jnp.dot(x, w1_ref[...], preferred_element_type=jnp.float32)
    f1 = jnp.maximum(f1 + b1_ref[...], 0.0).astype(jnp.bfloat16)
    acc_ref[...] += jnp.dot(f1, w2_ref[...], preferred_element_type=jnp.float32)

    @pl.when(kf == pl.num_programs(2) - 1)
    def _():
        y = acc_ref[...] + b2_ref[...] + h_ref[0].astype(jnp.float32)   # residual
        mean = jnp.mean(y, axis=-1, keepdims=True)
        var = jnp.mean((y - mean) ** 2, axis=-1, keepdims=True)
        o_ref[0] = ((y - mean) * jax.lax.rsqrt(var + eps)
                    * g_ref[...] + bb_ref[...]).astype(o_ref.dtype)


def ffn_res_ln(h, w1, b1, w2, b2, gamma, beta, *, eps=1e-6,
               ts_pref=512, tk_pref=512):
    B, S, d_model = h.shape
    dff = w1.shape[1]
    ts = _pick_tile(S, ts_pref, align=8)
    tk = _pick_tile(dff, tk_pref, align=128)
    est = sum([
        _nbytes((ts, d_model), jnp.bfloat16),
        _nbytes((d_model, tk), jnp.bfloat16),
        _nbytes((1, tk), jnp.float32),
        _nbytes((tk, d_model), jnp.bfloat16),
        3 * _nbytes((1, d_model), jnp.float32),
        _nbytes((ts, d_model), jnp.bfloat16),
        2 * _nbytes((ts, tk), jnp.float32),      # transient f1
        _nbytes((ts, d_model), jnp.float32),     # accumulator scratch
    ])
    return pl.pallas_call(
        functools.partial(_ffn_res_ln_kernel, eps=eps),
        out_shape=jax.ShapeDtypeStruct((B, S, d_model), jnp.bfloat16),
        grid=(B, S // ts, dff // tk),
        in_specs=[
            pl.BlockSpec((1, ts, d_model), lambda b, s, kf: (b, s, 0)),
            pl.BlockSpec((d_model, tk), lambda b, s, kf: (0, kf)),
            pl.BlockSpec((1, tk), lambda b, s, kf: (0, kf)),
            pl.BlockSpec((tk, d_model), lambda b, s, kf: (kf, 0)),
            pl.BlockSpec((1, d_model), lambda b, s, kf: (0, 0)),
            pl.BlockSpec((1, d_model), lambda b, s, kf: (0, 0)),
            pl.BlockSpec((1, d_model), lambda b, s, kf: (0, 0)),
        ],
        out_specs=pl.BlockSpec((1, ts, d_model), lambda b, s, kf: (b, s, 0)),
        scratch_shapes=[pltpu.VMEM((ts, d_model), jnp.float32)],
        compiler_params=_compiler_params(("parallel", "parallel", "arbitrary"), est),
    )(h, w1, b1.reshape(1, -1), w2, b2.reshape(1, -1),
      gamma.reshape(1, -1), beta.reshape(1, -1))


# --------------------------------------------------------------------------
# Glue: positional encoding, params, forward
# --------------------------------------------------------------------------

def positional_encoding(seq_len, d_model):
    position = jnp.arange(seq_len, dtype=jnp.float32)[:, None]
    div_term = jnp.exp(jnp.arange(0, d_model, 2, dtype=jnp.float32)
                       * (-math.log(10000.0) / d_model))
    pe = jnp.zeros((seq_len, d_model), jnp.float32)
    pe = pe.at[:, 0::2].set(jnp.sin(position * div_term))
    pe = pe.at[:, 1::2].set(jnp.cos(position * div_term))
    return pe  # (S, d_model)


def init_params(key, n_layers, n_head, d_k, d_v, d_model, dff):
    def nrm(k, shape, s=0.05, dtype=jnp.bfloat16):
        return (jax.random.normal(k, shape, jnp.float32) * s).astype(dtype)

    keys = jax.random.split(key, 1 + n_layers)
    params = {
        "n_head": n_head, "d_k": d_k, "d_v": d_v,
        "w_emb": nrm(keys[0], (dff, d_model)),        # src_word_emb (bias=False)
        "ln_g": jnp.ones((d_model,), jnp.float32),    # Encoder.layer_norm
        "ln_b": jnp.zeros((d_model,), jnp.float32),
        "layers": [],
    }
    for li in range(n_layers):
        lk = jax.random.split(keys[1 + li], 8)
        params["layers"].append({
            # Head-major weight layout.  A PyTorch (d_model, H*d_k) weight maps
            # via W.reshape(d_model, H, d_k).transpose(1, 0, 2); W_o via
            # W_o.reshape(H, d_v, d_model).
            "w_q": nrm(lk[0], (n_head, d_model, d_k)),
            "w_k": nrm(lk[1], (n_head, d_model, d_k)),
            "w_v": nrm(lk[2], (n_head, d_model, d_v)),
            "w_o": nrm(lk[3], (n_head, d_v, d_model)),
            "ln1_g": jnp.ones((d_model,), jnp.float32),
            "ln1_b": jnp.zeros((d_model,), jnp.float32),
            "w1": nrm(lk[4], (d_model, dff)),
            "b1": nrm(lk[5], (dff,), dtype=jnp.float32),
            "w2": nrm(lk[6], (dff, d_model)),
            "b2": nrm(lk[7], (d_model,), dtype=jnp.float32),
            "ln2_g": jnp.ones((d_model,), jnp.float32),
            "ln2_b": jnp.zeros((d_model,), jnp.float32),
        })
    return params


def encoder_forward(params, x, src_mask):
    # x: (S, B, dff) seq-first; src_mask: (B, S, S) with nonzero = attend.
    S, B, dff = x.shape
    d_model = params["w_emb"].shape[1]
    d_k = params["d_k"]

    # Single layout change at entry so per-batch blocks are contiguous; bf16
    # activations in HBM (LN / softmax / accumulation stay f32 in-kernel).
    x_bsd = jnp.transpose(x, (1, 0, 2)).astype(jnp.bfloat16)    # (B, S, dff)
    pe = positional_encoding(S, d_model)                        # (S, d_model)
    mask_i32 = (src_mask != 0).astype(jnp.int32)
    scale = 1.0 / math.sqrt(d_k)                                # folded into Q

    # dropout (position_enc.dropout, Encoder.dropout, layer dropouts) == identity
    h = embed_pe_ln(x_bsd, pe, params["w_emb"], params["ln_g"], params["ln_b"])

    for lp in params["layers"]:
        q, k, v = qkv_proj(h, lp["w_q"], lp["w_k"], lp["w_v"], scale=scale)
        h = attn_block(q, k, v, mask_i32, lp["w_o"], h, lp["ln1_g"], lp["ln1_b"])
        h = ffn_res_ln(h, lp["w1"], lp["b1"], lp["w2"], lp["b2"],
                       lp["ln2_g"], lp["ln2_b"])

    out = jnp.transpose(h, (1, 0, 2)).astype(jnp.float32)       # (S, B, d_model)
    return out, []


# --------------------------------------------------------------------------
# Main
# --------------------------------------------------------------------------

if __name__ == "__main__":
    # Small, forward-consistent shapes
    n_layers, n_head, d_k, d_v, d_model, dff = 2, 2, 16, 16, 32, 32
    S, B = 8, 2

    key = jax.random.PRNGKey(0)
    k_param, k_x = jax.random.split(key)
    params = init_params(k_param, n_layers, n_head, d_k, d_v, d_model, dff)

    x = jax.random.normal(k_x, (S, B, dff), jnp.float32)

    # pad mask: batch 0 attends to all 8 positions, batch 1 only to first 6
    lengths = jnp.array([8, 6])
    key_mask = (jnp.arange(S)[None, :] < lengths[:, None]).astype(jnp.float32)  # (B, S)
    src_mask = jnp.broadcast_to(key_mask[:, None, :], (B, S, S))                # (B, S, S)

    out, attn_list = encoder_forward(params, x, src_mask)
    out = jax.block_until_ready(out)

    assert out.shape == (S, B, d_model)
    assert bool(jnp.all(jnp.isfinite(out)))
    assert attn_list == []
    print("KERNEL_OK")
</pallas_src>

<mosaic_0001>
module attributes {stable_mosaic.version = 11 : i64} {
  func.func @_embed_pe_ln_kernel(%arg0: i32, %arg1: i32, %arg2: memref<1x8x32xbf16, #tpu.memory_space<vmem>>, %arg3: memref<8x32xf32, #tpu.memory_space<vmem>>, %arg4: memref<32x32xbf16, #tpu.memory_space<vmem>>, %arg5: memref<1x32xf32, #tpu.memory_space<vmem>>, %arg6: memref<1x32xf32, #tpu.memory_space<vmem>>, %arg7: memref<1x8x32xbf16, #tpu.memory_space<vmem>>) attributes {dimension_semantics = [#tpu.dimension_semantics<parallel>, #tpu.dimension_semantics<parallel>], iteration_bounds = array<i64: 2, 1>, scalar_prefetch = 0 : i64, scratch_operands = 0 : i64, tpu.core_type = #tpu.core_type<tc>, window_params = [{transform_indices = @transform_0, window_bounds = array<i64: 1, 8, 32>}, {transform_indices = @transform_1, window_bounds = array<i64: 8, 32>}, {pipeline_mode = #tpu.pipeline_mode<synchronous>, transform_indices = @transform_2, window_bounds = array<i64: 32, 32>}, {pipeline_mode = #tpu.pipeline_mode<synchronous>, transform_indices = @transform_3, window_bounds = array<i64: 1, 32>}, {pipeline_mode = #tpu.pipeline_mode<synchronous>, transform_indices = @transform_4, window_bounds = array<i64: 1, 32>}, {transform_indices = @transform_5, window_bounds = array<i64: 1, 8, 32>}]} {
    %c0 = arith.constant 0 : index
    %c0_0 = arith.constant 0 : index
    %c0_1 = arith.constant 0 : index
    %0 = vector.load %arg2[%c0, %c0_0, %c0_1] : memref<1x8x32xbf16, #tpu.memory_space<vmem>>, vector<1x8x32xbf16>
    %1 = vector.shape_cast %0 : vector<1x8x32xbf16> to vector<8x32xbf16>
    %c0_2 = arith.constant 0 : index
    %c0_3 = arith.constant 0 : index
    %2 = vector.load %arg4[%c0_2, %c0_3] : memref<32x32xbf16, #tpu.memory_space<vmem>>, vector<32x32xbf16>
    %cst = arith.constant dense<0.000000e+00> : vector<8x32xf32>
    %3 = tpu.matmul %1, %2, %cst {dimension_numbers = #tpu.dot_dimension_numbers<[1], [0], [0], [1], [0, 0, 1, 1], [], []>} : vector<8x32xbf16>, vector<32x32xbf16>, vector<8x32xf32> -> vector<8x32xf32>
    %c0_4 = arith.constant 0 : index
    %c0_5 = arith.constant 0 : index
    %4 = vector.load %arg3[%c0_4, %c0_5] : memref<8x32xf32, #tpu.memory_space<vmem>>, vector<8x32xf32>
    %5 = arith.addf %3, %4 : vector<8x32xf32>
    %cst_6 = arith.constant dense<0.000000e+00> : vector<8xf32>
    %6 = vector.multi_reduction <add>, %5, %cst_6 [1] : vector<8x32xf32> to vector<8xf32>
    %7 = vector.shape_cast %6 : vector<8xf32> to vector<8x1xf32>
    %cst_7 = arith.constant 3.200000e+01 : f32
    %8 = vector.broadcast %cst_7 : f32 to vector<8x1xf32>
    %9 = arith.divf %7, %8 : vector<8x1xf32>
    %10 = vector.broadcast %9 : vector<8x1xf32> to vector<8x32xf32>
    %11 = arith.subf %5, %10 : vector<8x32xf32>
    %12 = arith.mulf %11, %11 : vector<8x32xf32>
    %cst_8 = arith.constant dense<0.000000e+00> : vector<8xf32>
    %13 = vector.multi_reduction <add>, %12, %cst_8 [1] : vector<8x32xf32> to vector<8xf32>
    %14 = vector.shape_cast %13 : vector<8xf32> to vector<8x1xf32>
    %cst_9 = arith.constant 3.200000e+01 : f32
    %15 = vector.broadcast %cst_9 : f32 to vector<8x1xf32>
    %16 = arith.divf %14, %15 : vector<8x1xf32>
    %17 = vector.broadcast %9 : vector<8x1xf32> to vector<8x32xf32>
    %18 = arith.subf %5, %17 : vector<8x32xf32>
    %cst_10 = arith.constant 9.99999997E-7 : f32
    %19 = vector.broadcast %cst_10 : f32 to vector<8x1xf32>
    %20 = arith.addf %16, %19 : vector<8x1xf32>
    %21 = math.rsqrt %20 : vector<8x1xf32>
    %22 = vector.broadcast %21 : vector<8x1xf32> to vector<8x32xf32>
    %23 = arith.mulf %18, %22 : vector<8x32xf32>
    %c0_11 = arith.constant 0 : index
    %c0_12 = arith.constant 0 : index
    %24 = vector.load %arg5[%c0_11, %c0_12] : memref<1x32xf32, #tpu.memory_space<vmem>>, vector<1x32xf32>
    %25 = vector.broadcast %24 : vector<1x32xf32> to vector<8x32xf32>
    %26 = arith.mulf %23, %25 : vector<8x32xf32>
    %c0_13 = arith.constant 0 : index
    %c0_14 = arith.constant 0 : index
    %27 = vector.load %arg6[%c0_13, %c0_14] : memref<1x32xf32, #tpu.memory_space<vmem>>, vector<1x32xf32>
    %28 = vector.broadcast %27 : vector<1x32xf32> to vector<8x32xf32>
    %29 = arith.addf %26, %28 : vector<8x32xf32>
    %30 = arith.truncf %29 : vector<8x32xf32> to vector<8x32xbf16>
    %c0_15 = arith.constant 0 : index
    %c0_16 = arith.constant 0 : index
    %c0_17 = arith.constant 0 : index
    %31 = vector.load %arg7[%c0_15, %c0_16, %c0_17] : memref<1x8x32xbf16, #tpu.memory_space<vmem>>, vector<1x8x32xbf16>
    %32 = vector.shape_cast %31 : vector<1x8x32xbf16> to vector<8x32xbf16>
    %33 = vector.shape_cast %30 : vector<8x32xbf16> to vector<1x8x32xbf16>
    tpu.vector_store %arg7[%c0_15, %c0_16, %c0_17], %33 {strides = array<i32>} : memref<1x8x32xbf16, #tpu.memory_space<vmem>>, vector<1x8x32xbf16>,
    return
  }
  func.func @transform_0(%arg0: i32, %arg1: i32) -> (i32, i32, i32) {
    %c0_i32 = arith.constant 0 : i32
    %c0_i32_0 = arith.constant 0 : i32
    return %arg0, %arg1, %c0_i32 : i32, i32, i32
  }
  func.func @transform_1(%arg0: i32, %arg1: i32) -> (i32, i32) {
    %c0_i32 = arith.constant 0 : i32
    %c0_i32_0 = arith.constant 0 : i32
    return %arg1, %c0_i32 : i32, i32
  }
  func.func @transform_2(%arg0: i32, %arg1: i32) -> (i32, i32) {
    %c0_i32 = arith.constant 0 : i32
    %c0_i32_0 = arith.constant 0 : i32
    %c0_i32_1 = arith.constant 0 : i32
    return %c0_i32, %c0_i32_0 : i32, i32
  }
  func.func @transform_3(%arg0: i32, %arg1: i32) -> (i32, i32) {
    %c0_i32 = arith.constant 0 : i32
    %c0_i32_0 = arith.constant 0 : i32
    %c0_i32_1 = arith.constant 0 : i32
    return %c0_i32, %c0_i32_0 : i32, i32
  }
  func.func @transform_4(%arg0: i32, %arg1: i32) -> (i32, i32) {
    %c0_i32 = arith.constant 0 : i32
    %c0_i32_0 = arith.constant 0 : i32
    %c0_i32_1 = arith.constant 0 : i32
    return %c0_i32, %c0_i32_0 : i32, i32
  }
  func.func @transform_5(%arg0: i32, %arg1: i32) -> (i32, i32, i32) {
    %c0_i32 = arith.constant 0 : i32
    %c0_i32_0 = arith.constant 0 : i32
    return %arg0, %arg1, %c0_i32 : i32, i32, i32
  }
}

</mosaic_0001>

<llo_original>
// kernel: tpu_custom_call.1
$region0: #{tpu_custom_call.1}
  #allocation0 [shape = 'u32[]', space=smem, size = 0x4, offset = 0x4, fixed_abs, tag = 'smem constant byte address 0x4 - core index']
  #allocation1 [shape = 'u32[72,128]{1,0:T(1,128)}', space=vmem, size = 0x9000, scoped, tag = 'internal scratch']
  %s0 = inlined_call_operand.hbm [shape: bf16[2,8,32], index: 0, kind: input, shape index: {}]
  %s1 = inlined_call_operand.hbm [shape: f32[8,32], index: 1, kind: input, shape index: {}]
  %s2 = inlined_call_operand.hbm [shape: bf16[32,32], index: 2, kind: input, shape index: {}]
  %s3 = inlined_call_operand.vmem [shape: f32[1,32], index: 3, kind: input, shape index: {}]
  %s4 = inlined_call_operand.vmem [shape: f32[1,32], index: 4, kind: input, shape index: {}]
  %s5 = inlined_call_operand.hbm [shape: bf16[2,8,32], index: 5, kind: output, shape index: {}]
  %s6 = sld [smem:[#allocation0]]
  $region65: #{tpu_custom_call.1} parent=0
    _
  %s8 = ssub.s32 1, %s6
  %s9 = scalar_select 0, %s8, %s6
  $region1: #{tpu_custom_call.1} parent=0
    #allocation2 [shape = 'u8[4096]{0}', space=vmem, size = 0x1000, scoped, tag = 'input window, operand 0']
    #allocation3 [shape = 's32[2]{0}', space=sflag, size = 0x8, scoped, tag = 'scoped memory for tpu_custom_call.1']
    #allocation4 [shape = 's32[2]{0}', space=sflag, size = 0x8, scoped, tag = 'scoped memory for tpu_custom_call.1']
    #allocation5 [shape = 'u8[4096]{0}', space=vmem, size = 0x1000, scoped, tag = 'input window, operand 1, single buffered']
    #allocation6 [shape = 's32[1]{0}', space=sflag, size = 0x4, scoped, tag = 'scoped memory for tpu_custom_call.1']
    #allocation7 [shape = 'u8[8192]{0}', space=vmem, size = 0x2000, scoped, tag = 'input window, operand 2, single buffered']
    #allocation8 [shape = 'u8[4096]{0}', space=vmem, size = 0x1000, scoped, tag = 'output window, operand 0']
    %10 = vsyncpa [#allocation3], 0
    %s11 = scalar_lea.sflag [#allocation3], 1
    %12 = vsyncpa %s11, 0
    %13 = vsyncpa [#allocation6], 0
    %14 = vsyncpa [#allocation4], 0
    %s15 = scalar_lea.sflag [#allocation4], 1
    %16 = vsyncpa %s15, 0
    loop: start=0, step=1, limit=4
    $region2: #{tpu_custom_call.1} parent=1 // loop_pre_header
      _
    $region3: #{tpu_custom_call.1} parent=1 // loop_header
      %s18 = sphi 0, %s22
      %p19 = scmp.ge.s32.totalorder %s18, 4
      %s25 = sphi 0, %s37
      %s26 = sphi 0, %s33
      %s27 = sphi 0, %s25
      %s28 = sphi 0, %s26
      %s29 = sphi 0, %s27
      %s30 = sphi 0, %s28
      %s42 = sphi 0, %s44
      %s45 = sphi 0, %s42
      %s46 = sphi 0, %s45
      %s62 = sphi 0, %s46
      %s68 = sphi 0, %s70
      %s71 = sphi 0, %s68
      %s72 = sphi 0, %s71
      %s88 = sphi 0, %s72
      %s92 = sphi 0, %s92
      %s94 = sphi 0, %s92
      %s95 = sphi 0, %s94
      %s109 = sphi 0, %s95
      %s113 = sphi 0, %s113
      %s115 = sphi 0, %s113
      %s116 = sphi 0, %s115
      %s130 = sphi 0, %s116
      %s134 = sphi 0, %s134
      %s136 = sphi 0, %s134
      %s137 = sphi 0, %s136
      %s151 = sphi 0, %s137
      %s159 = sphi 0, %s161
      %s162 = sphi 0, %s159
      %s163 = sphi 0, %s162
      %s179 = sphi 0, %s163
    $region4: #{tpu_custom_call.1} parent=1 // loop_header_branch
      %21 = sbr.rel (%p19) target = $region8
    $region5: #{tpu_custom_call.1} parent=1 // loop_body
      %s23 = ssub.s32 %s18, 1
      %s24 = ssub.s32 %s18, 2
      %s31 = sadd.s32 1, %s26
      %p32 = scmp.ge.s32.totalorder %s31, 1
      %s33 = scalar_select %p32, 0, %s31
      %s34 = sadd.s32 1, %s25
      %s35 = scalar_select %p32, %s34, %s25
      %p36 = scmp.ge.s32.totalorder %s35, 2
      %s37 = scalar_select %p36, 0, %s35
      %s38 = ssub.s32 %s25, %s37
      %s39 = ssub.s32 %s26, %s33
      %s40 = sor.u32 %s38, %s39
      %p41 = scmp.eq.s32.totalorder %s40, 0
      %s43 = sadd.s32 %s42, 1
      %s44 = scalar_select %p41, %s42, %s43
      %p47 = pneg %p41
      %p48 = scmp.eq.s32.totalorder %s18, 1
      %p49 = por %p47, %p48
      %p50 = scmp.ne.s32.totalorder %s42, %s45
      %p51 = scmp.eq.s32.totalorder %s18, 0
      %p52 = por %p50, %p51
      %p53 = scmp.ne.s32.totalorder %s42, %s45
      %p54 = scmp.eq.s32.totalorder %s23, 1
      %p55 = por %p53, %p54
      %p56 = scmp.ne.s32.totalorder %s45, %s46
      %p57 = scmp.eq.s32.totalorder %s23, 0
      %p58 = por %p56, %p57
      %p59 = scmp.ne.s32.totalorder %s45, %s46
      %p60 = scmp.eq.s32.totalorder %s24, 1
      %p61 = por %p59, %p60
      %p63 = scmp.ne.s32.totalorder %s46, %s62
      %p64 = scmp.eq.s32.totalorder %s24, 0
      %p65 = por %p63, %p64
      %s66 = ssub.s32 %s26, %s33
      %p67 = scmp.eq.s32.totalorder %s66, 0
      %s69 = sadd.s32 %s68, 1
      %s70 = scalar_select %p67, %s68, %s69
      %p73 = pneg %p67
      %p74 = scmp.eq.s32.totalorder %s18, 1
      %p75 = por %p73, %p74
      %p76 = scmp.ne.s32.totalorder %s68, %s71
      %p77 = scmp.eq.s32.totalorder %s18, 0
      %p78 = por %p76, %p77
      %p79 = scmp.ne.s32.totalorder %s68, %s71
      %p80 = scmp.eq.s32.totalorder %s23, 1
      %p81 = por %p79, %p80
      %p82 = scmp.ne.s32.totalorder %s71, %s72
      %p83 = scmp.eq.s32.totalorder %s23, 0
      %p84 = por %p82, %p83
      %p85 = scmp.ne.s32.totalorder %s71, %s72
      %p86 = scmp.eq.s32.totalorder %s24, 1
      %p87 = por %p85, %p86
      %p89 = scmp.ne.s32.totalorder %s72, %s88
      %p90 = scmp.eq.s32.totalorder %s24, 0
      %p91 = por %p89, %p90
      %s93 = sadd.s32 %s92, 1
      %p96 = scmp.eq.s32.totalorder %s18, 1
      %p97 = scmp.ne.s32.totalorder %s92, %s94
      %p98 = scmp.eq.s32.totalorder %s18, 0
      %p99 = por %p97, %p98
      %p100 = scmp.ne.s32.totalorder %s92, %s94
      %p101 = scmp.eq.s32.totalorder %s23, 1
      %p102 = por %p100, %p101
      %p103 = scmp.ne.s32.totalorder %s94, %s95
      %p104 = scmp.eq.s32.totalorder %s23, 0
      %p105 = por %p103, %p104
      %p106 = scmp.ne.s32.totalorder %s94, %s95
      %p107 = scmp.eq.s32.totalorder %s24, 1
      %p108 = por %p106, %p107
      %p110 = scmp.ne.s32.totalorder %s95, %s109
      %p111 = scmp.eq.s32.totalorder %s24, 0
      %p112 = por %p110, %p111
      %s114 = sadd.s32 %s113, 1
      %p117 = scmp.eq.s32.totalorder %s18, 1
      %p118 = scmp.ne.s32.totalorder %s113, %s115
      %p119 = scmp.eq.s32.totalorder %s18, 0
      %p120 = por %p118, %p119
      %p121 = scmp.ne.s32.totalorder %s113, %s115
      %p122 = scmp.eq.s32.totalorder %s23, 1
      %p123 = por %p121, %p122
      %p124 = scmp.ne.s32.totalorder %s115, %s116
      %p125 = scmp.eq.s32.totalorder %s23, 0
      %p126 = por %p124, %p125
      %p127 = scmp.ne.s32.totalorder %s115, %s116
      %p128 = scmp.eq.s32.totalorder %s24, 1
      %p129 = por %p127, %p128
      %p131 = scmp.ne.s32.totalorder %s116, %s130
      %p132 = scmp.eq.s32.totalorder %s24, 0
      %p133 = por %p131, %p132
      %s135 = sadd.s32 %s134, 1
      %p138 = scmp.eq.s32.totalorder %s18, 1
      %p139 = scmp.ne.s32.totalorder %s134, %s136
      %p140 = scmp.eq.s32.totalorder %s18, 0
      %p141 = por %p139, %p140
      %p142 = scmp.ne.s32.totalorder %s134, %s136
      %p143 = scmp.eq.s32.totalorder %s23, 1
      %p144 = por %p142, %p143
      %p145 = scmp.ne.s32.totalorder %s136, %s137
      %p146 = scmp.eq.s32.totalorder %s23, 0
      %p147 = por %p145, %p146
      %p148 = scmp.ne.s32.totalorder %s136, %s137
      %p149 = scmp.eq.s32.totalorder %s24, 1
      %p150 = por %p148, %p149
      %p152 = scmp.ne.s32.totalorder %s137, %s151
      %p153 = scmp.eq.s32.totalorder %s24, 0
      %p154 = por %p152, %p153
      %s155 = ssub.s32 %s25, %s37
      %s156 = ssub.s32 %s26, %s33
      %s157 = sor.u32 %s155, %s156
      %p158 = scmp.eq.s32.totalorder %s157, 0
      %s160 = sadd.s32 %s159, 1
      %s161 = scalar_select %p158, %s159, %s160
      %p164 = pneg %p158
      %p165 = scmp.eq.s32.totalorder %s18, 1
      %p166 = por %p164, %p165
      %p167 = scmp.ne.s32.totalorder %s159, %s162
      %p168 = scmp.eq.s32.totalorder %s18, 0
      %p169 = por %p167, %p168
      %p170 = scmp.ne.s32.totalorder %s159, %s162
      %p171 = scmp.eq.s32.totalorder %s23, 1
      %p172 = por %p170, %p171
      %p173 = scmp.ne.s32.totalorder %s162, %s163
      %p174 = scmp.eq.s32.totalorder %s23, 0
      %p175 = por %p173, %p174
      %p176 = scmp.ne.s32.totalorder %s162, %s163
      %p177 = scmp.eq.s32.totalorder %s24, 1
      %p178 = por %p176, %p177
      %p180 = scmp.ne.s32.totalorder %s163, %s179
      %p181 = scmp.eq.s32.totalorder %s24, 0
      %p182 = por %p180, %p181
      %p183 = scmp.le.s32.totalorder 1, %s18
      %p184 = scmp.lt.s32.totalorder %s18, 3
      %p185 = pnand %p183, %p184
      %p186 = pneg %p185
      // Predicated region
      $region9: #{tpu_custom_call.1} parent=5 // pred_check
        _
      $region10: #{tpu_custom_call.1} parent=5 // pred_check_branch
        %188 = sbr.rel (%p185) target = $region12
      $region11: #{tpu_custom_call.1} parent=5 // pred_region
        %s189 = ssub.s32 %s18, 1
        // Predicated region
        $region13: #{tpu_custom_call.1} parent=11 // pred_check
          %p190 = pneg %p84
        $region14: #{tpu_custom_call.1} parent=11 // pred_check_branch
          %192 = sbr.rel (%p190) target = $region16
        $region15: #{tpu_custom_call.1} parent=11 // pred_region
          %194 = vsyncadd [#allocation6], 0
          %s195 = smul.addr %s28, 8
          %s196 = scalar_lea.hbm %s1, %s195
          %s198 = sshll.u32 %s196, 4
          %s199 = int_to_ptr.hbm [resolvable:$true] %s198
          %s200 = sshll.u32 [#allocation5], 4
          %s201 = int_to_ptr.vmem [resolvable:$true] %s200
          %203 = dma.hbm_to_vmem [thread:$0]  %s199, 128, %s201, [#allocation6]
        $region16: #{tpu_custom_call.1} parent=11 // pred_fallthru
          _
        // Predicated region
        $region17: #{tpu_custom_call.1} parent=11 // pred_check
          %p204 = pneg %p105
        $region18: #{tpu_custom_call.1} parent=11 // pred_check_branch
          %206 = sbr.rel (%p204) target = $region20
        $region19: #{tpu_custom_call.1} parent=11 // pred_region
          %208 = vsyncadd [#allocation6], 0
          %s209 = sshll.u32 %s2, 4
          %s210 = int_to_ptr.hbm [resolvable:$true] %s209
          %s211 = sshll.u32 [#allocation7], 4
          %s212 = int_to_ptr.vmem [resolvable:$true] %s211
          %217 = dma.hbm_to_vmem [thread:$0]  %s210, 256, %s212, [#allocation6], 64, 64, 4
        $region20: #{tpu_custom_call.1} parent=11 // pred_fallthru
          _
        // Predicated region
        $region21: #{tpu_custom_call.1} parent=11 // pred_check
          %p218 = pneg %p126
        $region22: #{tpu_custom_call.1} parent=11 // pred_check_branch
          %220 = sbr.rel (%p218) target = $region24
        $region23: #{tpu_custom_call.1} parent=11 // pred_region
          _
        $region24: #{tpu_custom_call.1} parent=11 // pred_fallthru
          _
        // Predicated region
        $region25: #{tpu_custom_call.1} parent=11 // pred_check
          %p221 = pneg %p147
        $region26: #{tpu_custom_call.1} parent=11 // pred_check_branch
          %223 = sbr.rel (%p221) target = $region28
        $region27: #{tpu_custom_call.1} parent=11 // pred_region
          _
        $region28: #{tpu_custom_call.1} parent=11 // pred_fallthru
          _
      $region12: #{tpu_custom_call.1} parent=5 // pred_fallthru
        _
      %p224 = scmp.lt.s32.totalorder %s18, 2
      // Predicated region
      $region29: #{tpu_custom_call.1} parent=5 // pred_check
        %p225 = pneg %p224
      $region30: #{tpu_custom_call.1} parent=5 // pred_check_branch
        %227 = sbr.rel (%p225) target = $region32
      $region31: #{tpu_custom_call.1} parent=5 // pred_region
        // Predicated region
        $region33: #{tpu_custom_call.1} parent=31 // pred_check
          %p228 = pneg %p52
        $region34: #{tpu_custom_call.1} parent=31 // pred_check_branch
          %230 = sbr.rel (%p228) target = $region36
        $region35: #{tpu_custom_call.1} parent=31 // pred_region
          %s231 = sand.u32 %s42, 1
          %s232 = scalar_lea.sflag [#allocation3], %s231
          %s233 = sand.u32 %s42, 1
          %s234 = smul.addr %s233, 4
          %s235 = scalar_lea.vmem [#allocation2], %s234
          %237 = vsyncadd %s232, 0
          %s238 = sadd.s32 %s26, %s25
          %s239 = smul.addr %s238, 4
          %s240 = scalar_lea.hbm %s0, %s239
          %s242 = sshll.u32 %s240, 4
          %s243 = int_to_ptr.hbm [resolvable:$true] %s242
          %s244 = sshll.u32 %s235, 4
          %s245 = int_to_ptr.vmem [resolvable:$true] %s244
          %247 = dma.hbm_to_vmem [thread:$0]  %s243, 64, %s245, %s232
        $region36: #{tpu_custom_call.1} parent=31 // pred_fallthru
          _
      $region32: #{tpu_custom_call.1} parent=5 // pred_fallthru
        _
      %p248 = scmp.le.s32.totalorder 1, %s18
      %p249 = scmp.lt.s32.totalorder %s18, 3
      %p250 = pnand %p248, %p249
      %p251 = pneg %p250
      // Predicated region
      $region37: #{tpu_custom_call.1} parent=5 // pred_check
        _
      $region38: #{tpu_custom_call.1} parent=5 // pred_check_branch
        %253 = sbr.rel (%p250) target = $region40
      $region39: #{tpu_custom_call.1} parent=5 // pred_region
        %s254 = ssub.s32 %s18, 1
        %s255 = sand.u32 %s45, 1
        %s256 = scalar_lea.sflag [#allocation3], %s255
        %s257 = sand.u32 %s45, 1
        %s258 = smul.addr %s257, 4
        %s259 = scalar_lea.vmem [#allocation2], %s258
        // Predicated region
        $region41: #{tpu_custom_call.1} parent=39 // pred_check
          %p260 = pneg %p58
        $region42: #{tpu_custom_call.1} parent=39 // pred_check_branch
          %262 = sbr.rel (%p260) target = $region44
        $region43: #{tpu_custom_call.1} parent=39 // pred_region
          %264 = dma.done %s256, 64
        $region44: #{tpu_custom_call.1} parent=39 // pred_fallthru
          _
        // Predicated region
        $region45: #{tpu_custom_call.1} parent=39 // pred_check
          %p265 = pneg %p84
        $region46: #{tpu_custom_call.1} parent=39 // pred_check_branch
          %267 = sbr.rel (%p265) target = $region48
        $region47: #{tpu_custom_call.1} parent=39 // pred_region
          %269 = dma.done [#allocation6], 128
        $region48: #{tpu_custom_call.1} parent=39 // pred_fallthru
          _
        // Predicated region
        $region49: #{tpu_custom_call.1} parent=39 // pred_check
          %p270 = pneg %p105
        $region50: #{tpu_custom_call.1} parent=39 // pred_check_branch
          %272 = sbr.rel (%p270) target = $region52
        $region51: #{tpu_custom_call.1} parent=39 // pred_region
          %274 = dma.done [#allocation6], 256
        $region52: #{tpu_custom_call.1} parent=39 // pred_fallthru
          _
        %s275 = sand.u32 %s45, 1
        %s276 = scalar_lea.sflag [#allocation3], %s275
        %s277 = sand.u32 %s45, 1
        %s278 = smul.addr %s277, 4
        %s279 = scalar_lea.vmem [#allocation2], %s278
        %p280 = pneg %p58
        %p281 = pneg %p55
        %p282 = pneg %p84
        %p283 = pneg %p81
        %p284 = pneg %p105
        %p285 = pneg %p102
        %p286 = pneg %p126
        %p287 = pneg %p123
        %p288 = pneg %p147
        %p289 = pneg %p144
        %p290 = pneg %p175
        %p291 = pneg %p172
        %s292 = sand.u32 %s162, 1
        %s293 = scalar_lea.sflag [#allocation4], %s292
        %s294 = sand.u32 %s162, 1
        %s295 = smul.addr %s294, 4
        %s296 = scalar_lea.vmem [#allocation8], %s295
        %v298 = vld [vmem:[%s259] sm:$0xf]
        %v299 = vld [vmem:[#allocation7] sm:$0xf]
        %v300 = vld [vmem:[#allocation7 + $0x4] sm:$0xf]
        %v301 = vld [vmem:[#allocation7 + $0x8] sm:$0xf]
        %v302 = vld [vmem:[#allocation7 + $0xc] sm:$0xf]
        %v303 = vld [vmem:[#allocation5] sm:$0xff]
        %v308 = vunpack.c.l.b16 %v299
        %v309 = vunpack.c.l.b16 %v300
        %v310 = vunpack.c.l.b16 %v301
        %v311 = vunpack.c.l.b16 %v302
        %v312 = vpack.c.b16 %v309, %v308
        %v313 = vpack.c.b16 %v311, %v310
        %vm316 = vcmask 261120
        %v318 = vsel %vm316, %v298, 0
        %320 = vmatpush.bf16.msra.mxu0 0
        %321 = vmatpush.bf16.msra.mxu0 0
        %322 = vmatpush.bf16.msra.mxu0 0
        %323 = vmatpush.bf16.msra.mxu0 0
        %324 = vmatpush.bf16.msra.mxu0 0
        %325 = vmatpush.bf16.msra.mxu0 0
        %326 = vmatpush.bf16.msra.mxu0 %v313
        %327 = vmatpush.bf16.msra.mxu0 %v312
        %328 = vmatmul.bf16.gmra.mxu0 %v318
        %v329 = vpop.f32.mrf.mxu0
        %v330 = vadd.f32 %v303, %v329
        %v331 = vpop.f32.mrf.mxu0
        %332 = vdwg.mxu0
        %v333 = vsel %vm316, %v330, 0.0
        %334 = vadd.xlane.f32.xlu0 %v333
        %v335 = vpop.xlane.xlu0 %334
        %v336 = vrcp.pop 32.0
        %v337 = vmul.f32 32.0, %v336
        %v338 = vsub.f32 1.0, %v337
        %v339 = vmul.f32 %v336, %v338
        %v340 = vadd.f32 %v336, %v339
        %vm341 = vweird.f32 %v336
        %v342 = vsel %vm341, %v336, %v340
        %v343 = vmul.f32 %v335, %v342
        %v344 = vsub.f32 %v330, %v343
        %v345 = vmul.f32 %v344, %v344
        %v346 = vsel %vm316, %v345, 0.0
        %347 = vadd.xlane.f32.xlu0 %v346
        %v348 = vpop.xlane.xlu0 %347
        %v349 = vmul.f32 %v348, %v342
        %v350 = vadd.f32 %v349, 1e-06
        %v351 = vrsqrt.pop %v350
        %v352 = vmul.f32 %v351, %v350
        %v353 = vmul.f32 %v352, %v351
        %v354 = vmul.f32 0.5, %v353
        %v355 = vsub.f32 1.5, %v354
        %v356 = vmul.f32 %v351, %v355
        %vm357 = vweird.f32 %v350
        %vm358 = vweird.f32 %v351
        %vm359 = vmor %vm357, %vm358
        %v360 = vsel %vm359, %v351, %v356
        %v361 = vmul.f32 %v344, %v360
        %v362 = vld [vmem:[%s3] sm:$0x1]
        %v364 = vperm.slane %v362, 0
        %v366 = vmul.f32 %v361, %v364
        %v367 = vld [vmem:[%s4] sm:$0x1]
        %v369 = vperm.slane %v367, 0
        %v371 = vadd.f32 %v366, %v369
        %v372 = vpack.c.bf16 %v371, %v371
        %vm373 = vcmask 257024
        %374 = vst.msk [vmem:[%s296] sm:$0xf] %vm373, %v372
        %s375 = sand.u32 %s162, 1
        %s376 = scalar_lea.sflag [#allocation4], %s375
        %s377 = sand.u32 %s162, 1
        %s378 = smul.addr %s377, 4
        %s379 = scalar_lea.vmem [#allocation8], %s378
        // Predicated region
        $region53: #{tpu_custom_call.1} parent=39 // pred_check
          %p380 = pneg %p172
        $region54: #{tpu_custom_call.1} parent=39 // pred_check_branch
          %382 = sbr.rel (%p380) target = $region56
        $region55: #{tpu_custom_call.1} parent=39 // pred_region
          %384 = vsyncadd %s376, 0
          %s385 = sadd.s32 %s28, %s27
          %s386 = smul.addr %s385, 4
          %s387 = scalar_lea.hbm %s5, %s386
          %s389 = sshll.u32 %s379, 4
          %s390 = int_to_ptr.vmem [resolvable:$true] %s389
          %s391 = sshll.u32 %s387, 4
          %s392 = int_to_ptr.hbm [resolvable:$true] %s391
          %394 = dma.vmem_to_hbm [thread:$0]  %s390, 64, %s392, %s376
        $region56: #{tpu_custom_call.1} parent=39 // pred_fallthru
          _
      $region40: #{tpu_custom_call.1} parent=5 // pred_fallthru
        _
      %p395 = scmp.le.s32.totalorder 2, %s18
      // Predicated region
      $region57: #{tpu_custom_call.1} parent=5 // pred_check
        %p396 = pneg %p395
      $region58: #{tpu_custom_call.1} parent=5 // pred_check_branch
        %398 = sbr.rel (%p396) target = $region60
      $region59: #{tpu_custom_call.1} parent=5 // pred_region
        %s399 = ssub.s32 %s18, 2
        // Predicated region
        $region61: #{tpu_custom_call.1} parent=59 // pred_check
          %p400 = pneg %p178
        $region62: #{tpu_custom_call.1} parent=59 // pred_check_branch
          %402 = sbr.rel (%p400) target = $region64
        $region63: #{tpu_custom_call.1} parent=59 // pred_region
          %s403 = sand.u32 %s163, 1
          %s404 = scalar_lea.sflag [#allocation4], %s403
          %s405 = sand.u32 %s163, 1
          %s406 = smul.addr %s405, 4
          %s407 = scalar_lea.vmem [#allocation8], %s406
          %409 = dma.done %s404, 64
        $region64: #{tpu_custom_call.1} parent=59 // pred_fallthru
          _
      $region60: #{tpu_custom_call.1} parent=5 // pred_fallthru
        _
    $region6: #{tpu_custom_call.1} parent=1 // loop_footer
      %s22 = sadd.s32 1, %s18
    $region7: #{tpu_custom_call.1} parent=1 // loop_footer_branch
      %17 = sbr.rel target = $region3
    $region8: #{tpu_custom_call.1} parent=1 // loop_exit
      _
    %410 = vsyncpa [#allocation3], 1
    %s411 = scalar_lea.sflag [#allocation3], 1
    %412 = vsyncpa %s411, 1
    %413 = vsyncpa [#allocation6], 1
    %414 = vsyncpa [#allocation4], 1
    %s415 = scalar_lea.sflag [#allocation4], 1
    %416 = vsyncpa %s415, 1

</llo_original>
